<compile_context>
chip_gen: v5e
topology: v5e:2x2
jax: 0.10.0
libtpu: 0.0.40
codegen_flags: <defaults>
</compile_context>

<pallas_src>
from functools import partial

import jax
import jax.numpy as jnp
from jax.experimental import pallas as pl
from jax.experimental.pallas import tpu as pltpu


def seqnet_kernel(x_ref, w_ref, b_ref, o_ref, *, w, L, c_in, inv_l):
    # x_ref: (BB, T, C_in)   w_ref: (w*C_in, C_out)   b_ref: (1, C_out)
    # o_ref: (BB, C_out)  -- 2-D, lane-dense output block.
    x = x_ref[...].astype(jnp.float32)  # one full-tile load; slice the value, not the ref

    # Windowed time-sums S_k[b, c] = sum_{t=k}^{k+L-1} x[b, t, c]: collapse the L axis
    # on the VPU/XLU before anything touches the MXU.  w is tiny -> static unroll.
    sums = [jnp.sum(x[:, k:k + L, :], axis=1) for k in range(w)]  # w x (BB, C_in), f32

    if w == 1 or c_in % 128 == 0:
        # Lane-aligned (or single) pieces: fuse into ONE matmul with K = w*C_in.
        s = sums[0] if w == 1 else jnp.concatenate(sums, axis=-1)      # (BB, w*C_in)
        acc = jnp.dot(s, w_ref[...], preferred_element_type=jnp.float32)
    else:
        # Small / 128-unaligned C_in: an unaligned lane-concat costs roughly what the
        # saved MXU pushes are worth, so accumulate w dots against 8-aligned weight
        # row slices instead (still one matmul's worth of MXU work, batch-wide M).
        acc = jnp.dot(sums[0], w_ref[:c_in, :], preferred_element_type=jnp.float32)
        for k in range(1, w):
            acc += jnp.dot(sums[k], w_ref[k * c_in:(k + 1) * c_in, :],
                           preferred_element_type=jnp.float32)

    # Mean as a single multiply by the precomputed 1/L; bias broadcast-added once.
    o_ref[...] = (acc * inv_l + b_ref[...]).astype(o_ref.dtype)


def seqnet_forward(x, weight, bias, w, *, block_b=256):
    """SeqNet forward.

    x:      (B, T, C_in) or (B, C_in)
    weight: (w, C_in, C_out)   (torch Conv1d weight (C_out, C_in, w) transposed (2, 1, 0))
    bias:   (C_out,)
    returns (B, C_out)
    """
    if x.ndim < 3:
        # torch: x.unsqueeze(1) -> sequence length 1; only valid when w == 1.
        assert w == 1, "2-D input implies sequence length 1, which requires w == 1"
        x = x[:, None, :]
    B, T, C_in = x.shape
    C_out = weight.shape[2]
    L = T - w + 1
    assert L >= 1, f"sequence length {T} shorter than kernel width {w}"

    w2d = weight.reshape(w * C_in, C_out)   # k-major rows; matches the kernel's layout
    b2d = bias.reshape(1, C_out)

    # Batch tiling: one grid step handles a whole batch tile (a per-sample grid is pure
    # per-step pipeline overhead, ~0.35us/step).  Cap the tile so the double-buffered x
    # block stays <= ~8 MiB, leaving ample headroom on v7x's smaller (64 MiB/TC) VMEM.
    bytes_per_row = 2 * T * C_in * x.dtype.itemsize          # x2 for double buffering
    bb = min(B, block_b, max(8, (8 << 20) // bytes_per_row))
    if bb < B:
        bb = max(8, (bb // 8) * 8)   # keep batch tiles sublane-aligned when B is tiled
    grid = (pl.cdiv(B, bb),)         # >1 parallel steps shard across the 2 TCs on v7x

    out = pl.pallas_call(
        partial(seqnet_kernel, w=w, L=L, c_in=C_in, inv_l=1.0 / L),
        out_shape=jax.ShapeDtypeStruct((B, C_out), x.dtype),
        grid_spec=pltpu.PrefetchScalarGridSpec(
            num_scalar_prefetch=0,
            grid=grid,
            in_specs=[
                pl.BlockSpec((bb, T, C_in), lambda i: (i, 0, 0)),
                pl.BlockSpec((w * C_in, C_out), lambda i: (0, 0)),  # loop-invariant weight
                pl.BlockSpec((1, C_out), lambda i: (0, 0)),         # loop-invariant bias
            ],
            out_specs=pl.BlockSpec((bb, C_out), lambda i: (i, 0)),  # 2-D lane-dense output
        ),
        compiler_params=pltpu.CompilerParams(
            dimension_semantics=("parallel",)),
    )(x, w2d, b2d)
    return out


if __name__ == "__main__":
    # Small shapes consistent with the module: inDims=32, outDims=32, w=3,
    # batch=2, sequence length=8.
    B, T, C_in, C_out, w = 2, 8, 32, 32, 3

    key = jax.random.PRNGKey(0)
    kx, kw, kb = jax.random.split(key, 3)
    x = jax.random.normal(kx, (B, T, C_in), jnp.float32)

    # PyTorch Conv1d weight layout is (outDims, inDims, w); transpose to (w, C_in, C_out).
    w_pt = jax.random.normal(kw, (C_out, C_in, w), jnp.float32) * 0.1
    b_pt = jax.random.normal(kb, (C_out,), jnp.float32) * 0.1
    weight = jnp.transpose(w_pt, (2, 1, 0))        # (w, C_in, C_out)

    out = seqnet_forward(x, weight, b_pt, w)
    out = jax.block_until_ready(out)

    # Pure-JAX reference (Conv1d over the permuted input + mean over the conv width).
    L = T - w + 1
    stacked = jnp.stack([x[:, k:k + L, :] for k in range(w)], axis=0)  # (w, B, L, C_in)
    ref = jnp.einsum("wblc,wco->bo", stacked, weight) / L + b_pt       # (B, C_out)

    assert out.shape == (B, C_out)
    assert jnp.allclose(out, ref, atol=1e-4, rtol=1e-4), "mismatch vs reference"
    print("KERNEL_OK")
</pallas_src>

<mosaic_0001>
module attributes {stable_mosaic.version = 11 : i64} {
  func.func @seqnet_kernel(%arg0: i32, %arg1: memref<2x8x32xf32, #tpu.memory_space<vmem>>, %arg2: memref<96x32xf32, #tpu.memory_space<vmem>>, %arg3: memref<1x32xf32, #tpu.memory_space<vmem>>, %arg4: memref<2x32xf32, #tpu.memory_space<vmem>>) attributes {dimension_semantics = [#tpu.dimension_semantics<parallel>], iteration_bounds = array<i64: 1>, scalar_prefetch = 0 : i64, scratch_operands = 0 : i64, tpu.core_type = #tpu.core_type<tc>, window_params = [{transform_indices = @transform_0, window_bounds = array<i64: 2, 8, 32>}, {pipeline_mode = #tpu.pipeline_mode<synchronous>, transform_indices = @transform_1, window_bounds = array<i64: 96, 32>}, {pipeline_mode = #tpu.pipeline_mode<synchronous>, transform_indices = @transform_2, window_bounds = array<i64: 1, 32>}, {transform_indices = @transform_3, window_bounds = array<i64: 2, 32>}]} {
    %c0 = arith.constant 0 : index
    %c0_0 = arith.constant 0 : index
    %c0_1 = arith.constant 0 : index
    %0 = vector.load %arg1[%c0, %c0_0, %c0_1] : memref<2x8x32xf32, #tpu.memory_space<vmem>>, vector<2x8x32xf32>
    %1 = vector.extract_strided_slice %0 {offsets = [0, 0, 0], sizes = [2, 6, 32], strides = [1, 1, 1]} : vector<2x8x32xf32> to vector<2x6x32xf32>
    %cst = arith.constant dense<0.000000e+00> : vector<2x32xf32>
    %2 = vector.multi_reduction <add>, %1, %cst [1] : vector<2x6x32xf32> to vector<2x32xf32>
    %3 = vector.extract_strided_slice %0 {offsets = [0, 1, 0], sizes = [2, 6, 32], strides = [1, 1, 1]} : vector<2x8x32xf32> to vector<2x6x32xf32>
    %cst_2 = arith.constant dense<0.000000e+00> : vector<2x32xf32>
    %4 = vector.multi_reduction <add>, %3, %cst_2 [1] : vector<2x6x32xf32> to vector<2x32xf32>
    %5 = vector.extract_strided_slice %0 {offsets = [0, 2, 0], sizes = [2, 6, 32], strides = [1, 1, 1]} : vector<2x8x32xf32> to vector<2x6x32xf32>
    %cst_3 = arith.constant dense<0.000000e+00> : vector<2x32xf32>
    %6 = vector.multi_reduction <add>, %5, %cst_3 [1] : vector<2x6x32xf32> to vector<2x32xf32>
    %c0_4 = arith.constant 0 : index
    %c0_5 = arith.constant 0 : index
    %7 = vector.load %arg2[%c0_4, %c0_5] : memref<96x32xf32, #tpu.memory_space<vmem>>, vector<32x32xf32>
    %cst_6 = arith.constant dense<0.000000e+00> : vector<2x32xf32>
    %8 = tpu.matmul %2, %7, %cst_6 {dimension_numbers = #tpu.dot_dimension_numbers<[1], [0], [0], [1], [0, 0, 1, 1], [], []>} : vector<2x32xf32>, vector<32x32xf32>, vector<2x32xf32> -> vector<2x32xf32>
    %c32 = arith.constant 32 : index
    %c0_7 = arith.constant 0 : index
    %9 = vector.load %arg2[%c32, %c0_7] : memref<96x32xf32, #tpu.memory_space<vmem>>, vector<32x32xf32>
    %cst_8 = arith.constant dense<0.000000e+00> : vector<2x32xf32>
    %10 = tpu.matmul %4, %9, %cst_8 {dimension_numbers = #tpu.dot_dimension_numbers<[1], [0], [0], [1], [0, 0, 1, 1], [], []>} : vector<2x32xf32>, vector<32x32xf32>, vector<2x32xf32> -> vector<2x32xf32>
    %11 = arith.addf %8, %10 : vector<2x32xf32>
    %c64 = arith.constant 64 : index
    %c0_9 = arith.constant 0 : index
    %12 = vector.load %arg2[%c64, %c0_9] : memref<96x32xf32, #tpu.memory_space<vmem>>, vector<32x32xf32>
    %cst_10 = arith.constant dense<0.000000e+00> : vector<2x32xf32>
    %13 = tpu.matmul %6, %12, %cst_10 {dimension_numbers = #tpu.dot_dimension_numbers<[1], [0], [0], [1], [0, 0, 1, 1], [], []>} : vector<2x32xf32>, vector<32x32xf32>, vector<2x32xf32> -> vector<2x32xf32>
    %14 = arith.addf %11, %13 : vector<2x32xf32>
    %cst_11 = arith.constant 0.166666672 : f32
    %15 = vector.broadcast %cst_11 : f32 to vector<2x32xf32>
    %16 = arith.mulf %14, %15 : vector<2x32xf32>
    %c0_12 = arith.constant 0 : index
    %c0_13 = arith.constant 0 : index
    %17 = vector.load %arg3[%c0_12, %c0_13] : memref<1x32xf32, #tpu.memory_space<vmem>>, vector<1x32xf32>
    %18 = vector.broadcast %17 : vector<1x32xf32> to vector<2x32xf32>
    %19 = arith.addf %16, %18 : vector<2x32xf32>
    %c0_14 = arith.constant 0 : index
    %c0_15 = arith.constant 0 : index
    %20 = vector.load %arg4[%c0_14, %c0_15] : memref<2x32xf32, #tpu.memory_space<vmem>>, vector<2x32xf32>
    tpu.vector_store %arg4[%c0_14, %c0_15], %19 {strides = array<i32>} : memref<2x32xf32, #tpu.memory_space<vmem>>, vector<2x32xf32>,
    return
  }
  func.func @transform_0(%arg0: i32) -> (i32, i32, i32) {
    %c0_i32 = arith.constant 0 : i32
    %c0_i32_0 = arith.constant 0 : i32
    %c0_i32_1 = arith.constant 0 : i32
    return %arg0, %c0_i32, %c0_i32_0 : i32, i32, i32
  }
  func.func @transform_1(%arg0: i32) -> (i32, i32) {
    %c0_i32 = arith.constant 0 : i32
    %c0_i32_0 = arith.constant 0 : i32
    %c0_i32_1 = arith.constant 0 : i32
    return %c0_i32, %c0_i32_0 : i32, i32
  }
  func.func @transform_2(%arg0: i32) -> (i32, i32) {
    %c0_i32 = arith.constant 0 : i32
    %c0_i32_0 = arith.constant 0 : i32
    %c0_i32_1 = arith.constant 0 : i32
    return %c0_i32, %c0_i32_0 : i32, i32
  }
  func.func @transform_3(%arg0: i32) -> (i32, i32) {
    %c0_i32 = arith.constant 0 : i32
    %c0_i32_0 = arith.constant 0 : i32
    return %arg0, %c0_i32 : i32, i32
  }
}

</mosaic_0001>

<llo_original>
// kernel: tpu_custom_call.1
$region0: #{tpu_custom_call.1}
  #allocation0 [shape = 'u32[]', space=smem, size = 0x4, offset = 0x4, fixed_abs, tag = 'smem constant byte address 0x4 - core index']
  #allocation1 [shape = 'u32[72,128]{1,0:T(1,128)}', space=vmem, size = 0x9000, scoped, tag = 'internal scratch']
  %s0 = inlined_call_operand.vmem [shape: f32[2,8,32], index: 0, kind: input, shape index: {}]
  %s1 = inlined_call_operand.vmem [shape: f32[96,32], index: 1, kind: input, shape index: {}]
  %s2 = inlined_call_operand.vmem [shape: f32[1,32], index: 2, kind: input, shape index: {}]
  %s3 = inlined_call_operand.hbm [shape: f32[2,32], index: 3, kind: output, shape index: {}]
  %s4 = sld [smem:[#allocation0]]
  $region22: #{tpu_custom_call.1} parent=0
    _
  %s6 = ssub.s32 1, %s4
  %s7 = scalar_select 0, %s6, %s4
  $region1: #{tpu_custom_call.1} parent=0
    #allocation2 [shape = 'u8[1024]{0}', space=vmem, size = 0x400, scoped, tag = 'output window, operand 0, single buffered']
    #allocation3 [shape = 's32[1]{0}', space=sflag, size = 0x4, scoped, tag = 'scoped memory for tpu_custom_call.1']
    %8 = vsyncpa [#allocation3], 0
    // Predicated region
    $region2: #{tpu_custom_call.1} parent=1 // pred_check
      _
    $region3: #{tpu_custom_call.1} parent=1 // pred_check_branch
      %10 = sbr.rel (0) target = $region5
    $region4: #{tpu_custom_call.1} parent=1 // pred_region
      _
    $region5: #{tpu_custom_call.1} parent=1 // pred_fallthru
      _
    // Predicated region
    $region6: #{tpu_custom_call.1} parent=1 // pred_check
      _
    $region7: #{tpu_custom_call.1} parent=1 // pred_check_branch
      %12 = sbr.rel (0) target = $region9
    $region8: #{tpu_custom_call.1} parent=1 // pred_region
      _
    $region9: #{tpu_custom_call.1} parent=1 // pred_fallthru
      _
    // Predicated region
    $region10: #{tpu_custom_call.1} parent=1 // pred_check
      _
    $region11: #{tpu_custom_call.1} parent=1 // pred_check_branch
      %14 = sbr.rel (0) target = $region13
    $region12: #{tpu_custom_call.1} parent=1 // pred_region
      _
    $region13: #{tpu_custom_call.1} parent=1 // pred_fallthru
      _
    %v15 = vld [vmem:[%s0] sm:$0xff]
    %v16 = vld [vmem:[%s0 + $0x8] sm:$0xff]
    %vm17 = vcmask 259072
    %v18 = vsel %vm17, %v15, 0.0
    %v19 = vrot.slane %v18, 4
    %v20 = vadd.f32 %v18, %v19
    %v21 = vrot.slane %v20, 2
    %v22 = vadd.f32 %v20, %v21
    %v23 = vrot.slane %v22, 1
    %v24 = vadd.f32 %v22, %v23
    %v25 = vsel %vm17, %v16, 0.0
    %v26 = vrot.slane %v25, 4
    %v27 = vadd.f32 %v25, %v26
    %v28 = vrot.slane %v27, 2
    %v29 = vadd.f32 %v27, %v28
    %v30 = vrot.slane %v29, 1
    %v31 = vadd.f32 %v29, %v30
    %v34 = vrot.slane %v15, 1
    %v35 = vrot.slane %v16, 1
    %v38 = vsel %vm17, %v34, 0.0
    %v39 = vrot.slane %v38, 4
    %v40 = vadd.f32 %v38, %v39
    %v41 = vrot.slane %v40, 2
    %v42 = vadd.f32 %v40, %v41
    %v43 = vrot.slane %v42, 1
    %v44 = vadd.f32 %v42, %v43
    %v45 = vsel %vm17, %v35, 0.0
    %v46 = vrot.slane %v45, 4
    %v47 = vadd.f32 %v45, %v46
    %v48 = vrot.slane %v47, 2
    %v49 = vadd.f32 %v47, %v48
    %v50 = vrot.slane %v49, 1
    %v51 = vadd.f32 %v49, %v50
    %v52 = vrot.slane %v15, 2
    %v53 = vrot.slane %v16, 2
    %v56 = vsel %vm17, %v52, 0.0
    %v57 = vrot.slane %v56, 4
    %v58 = vadd.f32 %v56, %v57
    %v59 = vrot.slane %v58, 2
    %v60 = vadd.f32 %v58, %v59
    %v61 = vrot.slane %v60, 1
    %v62 = vadd.f32 %v60, %v61
    %v63 = vsel %vm17, %v53, 0.0
    %v64 = vrot.slane %v63, 4
    %v65 = vadd.f32 %v63, %v64
    %v66 = vrot.slane %v65, 2
    %v67 = vadd.f32 %v65, %v66
    %v68 = vrot.slane %v67, 1
    %v69 = vadd.f32 %v67, %v68
    %v70 = vld [vmem:[%s1] sm:$0xff]
    %v71 = vld [vmem:[%s1 + $0x8] sm:$0xff]
    %v72 = vld [vmem:[%s1 + $0x10] sm:$0xff]
    %v73 = vld [vmem:[%s1 + $0x18] sm:$0xff]
    %v74 = vld [vmem:[%s1 + $0x20] sm:$0xff]
    %v75 = vld [vmem:[%s1 + $0x28] sm:$0xff]
    %v76 = vld [vmem:[%s1 + $0x30] sm:$0xff]
    %v77 = vld [vmem:[%s1 + $0x38] sm:$0xff]
    %vm80 = vcmask 1041409
    %v81 = vsel %vm80, %v51, %v44
    %vm82 = vcmask 261120
    %v83 = vsel %vm82, %v81, 0
    %85 = vmatpush.msra.mxu0 0.0
    %86 = vmatpush.msra.mxu0 0.0
    %87 = vmatpush.msra.mxu0 0.0
    %88 = vmatpush.msra.mxu0 0.0
    %89 = vmatpush.msra.mxu0 0.0
    %90 = vmatpush.msra.mxu0 0.0
    %91 = vmatpush.msra.mxu0 0.0
    %92 = vmatpush.msra.mxu0 0.0
    %93 = vmatpush.msra.mxu0 0.0
    %94 = vmatpush.msra.mxu0 0.0
    %95 = vmatpush.msra.mxu0 0.0
    %96 = vmatpush.msra.mxu0 0.0
    %97 = vmatpush.msra.mxu0 %v77
    %98 = vmatpush.msra.mxu0 %v76
    %99 = vmatpush.msra.mxu0 %v75
    %100 = vmatpush.msra.mxu0 %v74
    %101 = vmatmul.f32.gmra.mxu0 %v83
    %v102 = vpop.f32.mrf.mxu0
    %v103 = vadd.f32 0.0, %v102
    %104 = vdwg.mxu0
    %v107 = vsel %vm80, %v31, %v24
    %v108 = vsel %vm82, %v107, 0
    %110 = vmatpush.msra.mxu0 0.0
    %111 = vmatpush.msra.mxu0 0.0
    %112 = vmatpush.msra.mxu0 0.0
    %113 = vmatpush.msra.mxu0 0.0
    %114 = vmatpush.msra.mxu0 0.0
    %115 = vmatpush.msra.mxu0 0.0
    %116 = vmatpush.msra.mxu0 0.0
    %117 = vmatpush.msra.mxu0 0.0
    %118 = vmatpush.msra.mxu0 0.0
    %119 = vmatpush.msra.mxu0 0.0
    %120 = vmatpush.msra.mxu0 0.0
    %121 = vmatpush.msra.mxu0 0.0
    %122 = vmatpush.msra.mxu0 %v73
    %123 = vmatpush.msra.mxu0 %v72
    %124 = vmatpush.msra.mxu0 %v71
    %125 = vmatpush.msra.mxu0 %v70
    %126 = vmatmul.f32.gmra.mxu0 %v108
    %v127 = vpop.f32.mrf.mxu0
    %v128 = vadd.f32 %v103, %v127
    %129 = vdwg.mxu0
    %v130 = vld [vmem:[%s1 + $0x40] sm:$0xff]
    %v131 = vld [vmem:[%s1 + $0x48] sm:$0xff]
    %v132 = vld [vmem:[%s1 + $0x50] sm:$0xff]
    %v133 = vld [vmem:[%s1 + $0x58] sm:$0xff]
    %v136 = vsel %vm80, %v69, %v62
    %v137 = vsel %vm82, %v136, 0
    %139 = vmatpush.msra.mxu0 0.0
    %140 = vmatpush.msra.mxu0 0.0
    %141 = vmatpush.msra.mxu0 0.0
    %142 = vmatpush.msra.mxu0 0.0
    %143 = vmatpush.msra.mxu0 0.0
    %144 = vmatpush.msra.mxu0 0.0
    %145 = vmatpush.msra.mxu0 0.0
    %146 = vmatpush.msra.mxu0 0.0
    %147 = vmatpush.msra.mxu0 0.0
    %148 = vmatpush.msra.mxu0 0.0
    %149 = vmatpush.msra.mxu0 0.0
    %150 = vmatpush.msra.mxu0 0.0
    %151 = vmatpush.msra.mxu0 %v133
    %152 = vmatpush.msra.mxu0 %v132
    %153 = vmatpush.msra.mxu0 %v131
    %154 = vmatpush.msra.mxu0 %v130
    %155 = vmatmul.f32.gmra.mxu0 %v137
    %v156 = vpop.f32.mrf.mxu0
    %v157 = vadd.f32 0.0, %v156
    %158 = vdwg.mxu0
    %v159 = vadd.f32 %v128, %v157
    %v160 = vmul.f32 %v159, 0.16666667
    %v161 = vld [vmem:[%s2] sm:$0x1]
    %v163 = vperm.slane %v161, 0
    %v165 = vadd.f32 %v160, %v163
    %vm166 = vcmask 254976
    %167 = vst.msk [vmem:[#allocation2] sm:$0x3] %vm166, %v165
    // Predicated region
    $region14: #{tpu_custom_call.1} parent=1 // pred_check
      _
    $region15: #{tpu_custom_call.1} parent=1 // pred_check_branch
      %169 = sbr.rel (0) target = $region17
    $region16: #{tpu_custom_call.1} parent=1 // pred_region
      %171 = vsyncadd [#allocation3], 0
      %s173 = sshll.u32 [#allocation2], 4
      %s174 = int_to_ptr.vmem [resolvable:$true] %s173
      %s175 = sshll.u32 %s3, 4
      %s176 = int_to_ptr.hbm [resolvable:$true] %s175
      %178 = dma.vmem_to_hbm [thread:$0]  %s174, 32, %s176, [#allocation3]
    $region17: #{tpu_custom_call.1} parent=1 // pred_fallthru
      _
    // Predicated region
    $region18: #{tpu_custom_call.1} parent=1 // pred_check
      _
    $region19: #{tpu_custom_call.1} parent=1 // pred_check_branch
      %180 = sbr.rel (0) target = $region21
    $region20: #{tpu_custom_call.1} parent=1 // pred_region
      %182 = dma.done [#allocation3], 32
    $region21: #{tpu_custom_call.1} parent=1 // pred_fallthru
      _
    %183 = vsyncpa [#allocation3], 1

</llo_original>
